<compile_context>
chip_gen: v6e
topology: v6e:2x2x1
jax: 0.10.0
libtpu: 0.0.40
codegen_flags: <defaults>
</compile_context>

<pallas_src>
import math

import jax
import jax.numpy as jnp
from jax.experimental import pallas as pl
from jax.experimental.pallas import tpu as pltpu

LANE = 128                  # TPU vreg lane width
DEFAULT_BLOCK_ROWS = 4096   # 4096 x 128 x 4B = 2 MiB per f32 buffer


def _copy_kernel(x_ref, o_ref):
    # Pure pass-through: load the whole lane-dense tile and store it back.
    o_ref[...] = x_ref[...]


def _lane_dense_copy_impl(x_flat: jax.Array) -> jax.Array:
    """Identity copy of a (rows, 128) lane-dense slab via Pallas."""
    rows, lanes = x_flat.shape

    # Full-array block for small inputs; otherwise tile rows so each block is
    # ~2 MiB (f32) and a multiple of 8 sublanes.
    block_rows = rows if rows <= DEFAULT_BLOCK_ROWS else DEFAULT_BLOCK_ROWS
    grid = (pl.cdiv(rows, block_rows),)

    return pl.pallas_call(
        _copy_kernel,
        out_shape=jax.ShapeDtypeStruct(x_flat.shape, x_flat.dtype),
        grid=grid,
        in_specs=[pl.BlockSpec((block_rows, lanes), lambda i: (i, 0))],
        out_specs=pl.BlockSpec((block_rows, lanes), lambda i: (i, 0)),
        # Output aliases the input HBM buffer: no second HBM allocation,
        # no extra HBM write target.
        input_output_aliases={0: 0},
        compiler_params=pltpu.CompilerParams(
            dimension_semantics=("parallel",)),
    )(x_flat)


# Donate the flattened slab so XLA can honor the input/output alias.
_lane_dense_copy = jax.jit(_lane_dense_copy_impl, donate_argnums=0)


def print_module_forward(x: jax.Array, *, use_pallas: bool = True) -> jax.Array:
    """Equivalent of Print().forward(x): prints the shape, returns x unchanged."""
    # Matches `print(x.shape)` in the PyTorch module (Python-level side effect;
    # under jax.jit this fires once at trace time since shapes are static).
    print(tuple(x.shape))

    if not use_pallas:
        # Optimal path for a pure pass-through: zero data movement.
        return x

    numel = math.prod(x.shape)
    if numel == 0 or numel % LANE != 0:
        # Can't present a lane-dense slab without padding; the op is an
        # identity, so just return x (no copy needed, semantics preserved).
        return x

    x_flat = jnp.reshape(x, (numel // LANE, LANE))
    y_flat = _lane_dense_copy(x_flat)
    return jnp.reshape(y_flat, x.shape)


if __name__ == "__main__":
    key = jax.random.PRNGKey(0)
    # Small NCHW activation, consistent with "in between conv layers".
    x = jax.random.normal(key, (2, 4, 16, 16), dtype=jnp.float32)

    y = print_module_forward(x)
    y = jax.block_until_ready(y)

    # Identity semantics check.
    assert y.shape == x.shape
    assert y.dtype == x.dtype
    assert bool(jnp.all(y == x))

    print("KERNEL_OK")
</pallas_src>

<mosaic_0001>
module attributes {stable_mosaic.version = 11 : i64} {
  func.func @_copy_kernel(%arg0: i32, %arg1: memref<16x128xf32, #tpu.memory_space<vmem>>, %arg2: memref<16x128xf32, #tpu.memory_space<vmem>>) attributes {dimension_semantics = [#tpu.dimension_semantics<parallel>], iteration_bounds = array<i64: 1>, scalar_prefetch = 0 : i64, scratch_operands = 0 : i64, tpu.core_type = #tpu.core_type<tc>, window_params = [{transform_indices = @transform_0, window_bounds = array<i64: 16, 128>}, {transform_indices = @transform_1, window_bounds = array<i64: 16, 128>}]} {
    %c0 = arith.constant 0 : index
    %c0_0 = arith.constant 0 : index
    %0 = vector.load %arg1[%c0, %c0_0] : memref<16x128xf32, #tpu.memory_space<vmem>>, vector<16x128xf32>
    %c0_1 = arith.constant 0 : index
    %c0_2 = arith.constant 0 : index
    %1 = vector.load %arg2[%c0_1, %c0_2] : memref<16x128xf32, #tpu.memory_space<vmem>>, vector<16x128xf32>
    tpu.vector_store %arg2[%c0_1, %c0_2], %0 {strides = array<i32>} : memref<16x128xf32, #tpu.memory_space<vmem>>, vector<16x128xf32>,
    return
  }
  func.func @transform_0(%arg0: i32) -> (i32, i32) {
    %c0_i32 = arith.constant 0 : i32
    %c0_i32_0 = arith.constant 0 : i32
    return %arg0, %c0_i32 : i32, i32
  }
  func.func @transform_1(%arg0: i32) -> (i32, i32) {
    %c0_i32 = arith.constant 0 : i32
    %c0_i32_0 = arith.constant 0 : i32
    return %arg0, %c0_i32 : i32, i32
  }
}

</mosaic_0001>

<llo_original>
// kernel: _lane_dense_copy_impl.1
$region0: #{_lane_dense_copy_impl.1}
  #allocation0 [shape = 'u32[]', space=smem, size = 0x4, offset = 0x4, fixed_abs, tag = 'smem constant byte address 0x4 - core index']
  #allocation1 [shape = 'u32[144,128]{1,0:T(1,128)}', space=vmem, size = 0x12000, scoped, tag = 'internal scratch']
  %s0 = inlined_call_operand.hbm [shape: f32[16,128], index: 0, kind: input, shape index: {}, may-alias: {0,1}]
  %s1 = inlined_call_operand.hbm [shape: f32[16,128], index: 1, kind: output, shape index: {}, may-alias: {0,1}]
  %s2 = sld [smem:[#allocation0]]
  $region18: #{_lane_dense_copy_impl.1} parent=0
    _
  %s4 = ssub.s32 1, %s2
  %s5 = scalar_select 0, %s4, %s2
  $region1: #{_lane_dense_copy_impl.1} parent=0
    #allocation2 [shape = 'u8[8192]{0}', space=vmem, size = 0x2000, scoped, tag = 'input window, operand 0, single buffered']
    #allocation3 [shape = 's32[1]{0}', space=sflag, size = 0x4, scoped, tag = 'scoped memory for _lane_dense_copy_impl.1']
    #allocation4 [shape = 's32[1]{0}', space=sflag, size = 0x4, scoped, tag = 'scoped memory for _lane_dense_copy_impl.1']
    #allocation5 [shape = 'u8[8192]{0}', space=vmem, size = 0x2000, scoped, tag = 'output window, operand 0, single buffered']
    %6 = vsyncpa [#allocation3], 0
    %7 = vsyncpa [#allocation4], 0
    // Predicated region
    $region2: #{_lane_dense_copy_impl.1} parent=1 // pred_check
      _
    $region3: #{_lane_dense_copy_impl.1} parent=1 // pred_check_branch
      %9 = sbr.rel (0) target = $region5
    $region4: #{_lane_dense_copy_impl.1} parent=1 // pred_region
      %s11 = ssub.s32 256, 256
      %12 = vsyncadd [#allocation3], %s11
      %s13 = sshll.u32 [#allocation2], 4
      %s14 = int_to_ptr.vmem [resolvable:$true] %s13
      %19 = dma.hbm_to_vmem [thread:$0]  %s0, 256, %s14, [#allocation3], 128, 128, 8
    $region5: #{_lane_dense_copy_impl.1} parent=1 // pred_fallthru
      _
    // Predicated region
    $region6: #{_lane_dense_copy_impl.1} parent=1 // pred_check
      _
    $region7: #{_lane_dense_copy_impl.1} parent=1 // pred_check_branch
      %21 = sbr.rel (0) target = $region9
    $region8: #{_lane_dense_copy_impl.1} parent=1 // pred_region
      %22 = dma.done [#allocation3], 256
    $region9: #{_lane_dense_copy_impl.1} parent=1 // pred_fallthru
      _
    %v23 = vld [vmem:[#allocation2] sm:$0xff]
    %v24 = vld [vmem:[#allocation2 + $0x8] sm:$0xff]
    %25 = vst [vmem:[#allocation5] sm:$0xff] %v23
    %26 = vst [vmem:[#allocation5 + $0x8] sm:$0xff] %v24
    // Predicated region
    $region10: #{_lane_dense_copy_impl.1} parent=1 // pred_check
      _
    $region11: #{_lane_dense_copy_impl.1} parent=1 // pred_check_branch
      %28 = sbr.rel (0) target = $region13
    $region12: #{_lane_dense_copy_impl.1} parent=1 // pred_region
      %s30 = ssub.s32 256, 256
      %31 = vsyncadd [#allocation4], %s30
      %s32 = sshll.u32 [#allocation5], 4
      %s33 = int_to_ptr.vmem [resolvable:$true] %s32
      %38 = dma.vmem_to_hbm [thread:$0]  %s33, 256, %s1, [#allocation4], 128, 128, 8
    $region13: #{_lane_dense_copy_impl.1} parent=1 // pred_fallthru
      _
    // Predicated region
    $region14: #{_lane_dense_copy_impl.1} parent=1 // pred_check
      _
    $region15: #{_lane_dense_copy_impl.1} parent=1 // pred_check_branch
      %40 = sbr.rel (0) target = $region17
    $region16: #{_lane_dense_copy_impl.1} parent=1 // pred_region
      %41 = dma.done [#allocation4], 256
    $region17: #{_lane_dense_copy_impl.1} parent=1 // pred_fallthru
      _
    %42 = vsyncpa [#allocation3], 1
    %43 = vsyncpa [#allocation4], 1

</llo_original>
